<compile_context>
chip_gen: v5e
topology: v5e:2x2
jax: 0.10.0
libtpu: 0.0.40
codegen_flags: <defaults>
</compile_context>

<pallas_src>
import numpy as np
import jax
import jax.numpy as jnp
from jax.experimental import pallas as pl
from jax.experimental.pallas import tpu as pltpu

EPS = 1e-6


def _round_up(a, b):
    return ((a + b - 1) // b) * b


def _gmfd_kernel(lhs_ref, rhs_ref, out_ref):
    # lhs_ref: (TB, n, 2n)   [Re(V)*lam_mod | Im(V)*lam_mod]
    # rhs_ref: (TB, 2n, n)   [Re(V^-1) ; -Im(V^-1)]
    # out_ref: (TB, n*n)     lane-dense flattened symmetric result
    m = jnp.einsum('bij,bjk->bik', lhs_ref[...], rhs_ref[...],
                   preferred_element_type=jnp.float32)          # Re(V D V^-1)
    sym = 0.5 * (m + jnp.swapaxes(m, -1, -2))                   # (M + M^T)/2
    out_ref[...] = sym.reshape(out_ref.shape)


def _vmem_capacity_bytes():
    try:
        info = pltpu.get_tpu_info()
        return int(getattr(info, "vmem_capacity_bytes", 64 * 1024 * 1024))
    except Exception:
        return 64 * 1024 * 1024   # conservative (v7x-sized) fallback


def _tile_bytes(n):
    # Per-matrix double-buffered VMEM footprint, including (8,128) tiling
    # inflation of the two small-last-dim input operands.
    lhs_tile = _round_up(n, 8) * _round_up(2 * n, 128) * 4
    rhs_tile = _round_up(2 * n, 8) * _round_up(n, 128) * 4
    out_tile = _round_up(n * n, 128) * 4
    return 2 * (lhs_tile + rhs_tile + out_tile)


def _pick_tb(be, n, vmem_bytes):
    per_matrix = _tile_bytes(n)
    budget = int(vmem_bytes * 0.35)
    tb = max(8, (budget // per_matrix) // 8 * 8)
    tb = min(tb, 512)
    # Keep the grid >= 4 steps when there is enough work so "parallel"
    # dimension semantics can shard steps across TensorCores (v7x megacore).
    tb = min(tb, max(8, _round_up(pl.cdiv(be, 4), 8)))
    return tb


def gmfd_forward(x, tb=None):
    """x: (B, E, h, w) float array, h == w. Returns (B, E, h, w) float32."""
    B, E, h, w = x.shape
    assert h == w, "Gmfd operates on square submatrices"
    n = h
    be = B * E

    # ---- host-side glue: general eigendecomposition + inverse (no TPU op) ----
    # TODO(synk): chunk the host eig/inv over be, device_put each chunk
    #             asynchronously and dispatch one pallas_call per chunk so the
    #             host work and H2D transfer overlap TPU execution.
    x_np = np.asarray(x, dtype=np.float64).reshape(be, n, n)
    eigvals, eigvecs = np.linalg.eig(x_np)            # complex128, batched
    vinv = np.linalg.inv(eigvecs)

    lam_abs = np.abs(eigvals)                                     # (be, n) f64
    lam_mod = lam_abs + EPS * lam_abs.min(axis=-1, keepdims=True)

    # Re(V @ diag(lam_mod) @ V^-1) = [Vr*d | Vi*d] @ [Wr ; -Wi]  (one matmul)
    lhs = np.concatenate([eigvecs.real * lam_mod[:, None, :],
                          eigvecs.imag * lam_mod[:, None, :]],
                         axis=-1).astype(np.float32)              # (be, n, 2n)
    rhs = np.concatenate([vinv.real, -vinv.imag],
                         axis=-2).astype(np.float32)              # (be, 2n, n)

    vmem_bytes = _vmem_capacity_bytes()
    if tb is None:
        tb = _pick_tb(be, n, vmem_bytes)
    tb = max(8, _round_up(tb, 8))

    be_p = _round_up(be, tb)
    if be_p != be:
        pad = be_p - be
        lhs = np.concatenate([lhs, np.zeros((pad, n, 2 * n), np.float32)], 0)
        rhs = np.concatenate([rhs, np.zeros((pad, 2 * n, n), np.float32)], 0)

    grid = (be_p // tb,)

    per_matrix = _tile_bytes(n)
    vmem_limit = max(32 << 20,
                     min(int(vmem_bytes * 0.75),
                         per_matrix * tb + (16 << 20)))

    cost = pl.CostEstimate(
        flops=int(be_p * (2 * n * n * (2 * n) + 3 * n * n)),
        transcendentals=0,
        bytes_accessed=int(be_p * (n * 2 * n + 2 * n * n + n * n) * 4))

    out = pl.pallas_call(
        _gmfd_kernel,
        out_shape=jax.ShapeDtypeStruct((be_p, n * n), jnp.float32),
        grid=grid,
        in_specs=[
            pl.BlockSpec((tb, n, 2 * n), lambda i: (i, 0, 0)),   # pre-scaled V
            pl.BlockSpec((tb, 2 * n, n), lambda i: (i, 0, 0)),   # stacked V^-1
        ],
        out_specs=pl.BlockSpec((tb, n * n), lambda i: (i, 0)),
        compiler_params=pltpu.CompilerParams(
            dimension_semantics=("parallel",),
            vmem_limit_bytes=int(vmem_limit)),
        cost_estimate=cost,
    )(jnp.asarray(lhs), jnp.asarray(rhs))

    # Padded tail rows are dropped here; keep this slice adjacent to the pad
    # logic above (padded rows are all-zero and must never feed reductions).
    return out[:be].reshape(B, E, n, n)


def _reference_forward(x_np):
    """Pure numpy mirror of the PyTorch module (real part of the result)."""
    B, E, h, w = x_np.shape
    out = np.empty((B, E, h, w), dtype=np.float64)
    for i in range(B):
        for j in range(E):
            a = x_np[i, j].astype(np.float64)
            s, u = np.linalg.eig(a)
            sa = np.abs(s)
            mod = sa + EPS * np.min(sa)
            m = u @ np.diag(mod) @ np.linalg.inv(u)
            out[i, j] = np.real((m + m.T) / 2.0)
    return out


if __name__ == "__main__":
    key = jax.random.PRNGKey(0)
    B, E, H, W = 2, 4, 16, 16
    x = jax.random.normal(key, (B, E, H, W), dtype=jnp.float32)

    out = gmfd_forward(x)
    out = jax.block_until_ready(out)

    ref = _reference_forward(np.asarray(x))
    if not np.allclose(np.asarray(out), ref, rtol=1e-2, atol=1e-2):
        raise AssertionError("Pallas Gmfd output does not match numpy reference")

    print("KERNEL_OK")
</pallas_src>

<mosaic_0001>
module attributes {stable_mosaic.version = 11 : i64} {
  func.func @_gmfd_kernel(%arg0: i32, %arg1: memref<8x16x32xf32, #tpu.memory_space<vmem>>, %arg2: memref<8x32x16xf32, #tpu.memory_space<vmem>>, %arg3: memref<8x256xf32, #tpu.memory_space<vmem>>) attributes {dimension_semantics = [#tpu.dimension_semantics<parallel>], iteration_bounds = array<i64: 1>, scalar_prefetch = 0 : i64, scratch_operands = 0 : i64, tpu.core_type = #tpu.core_type<tc>, window_params = [{transform_indices = @transform_0, window_bounds = array<i64: 8, 16, 32>}, {transform_indices = @transform_1, window_bounds = array<i64: 8, 32, 16>}, {transform_indices = @transform_2, window_bounds = array<i64: 8, 256>}]} {
    %c0 = arith.constant 0 : index
    %c0_0 = arith.constant 0 : index
    %c0_1 = arith.constant 0 : index
    %0 = vector.load %arg1[%c0, %c0_0, %c0_1] : memref<8x16x32xf32, #tpu.memory_space<vmem>>, vector<8x16x32xf32>
    %c0_2 = arith.constant 0 : index
    %c0_3 = arith.constant 0 : index
    %c0_4 = arith.constant 0 : index
    %1 = vector.load %arg2[%c0_2, %c0_3, %c0_4] : memref<8x32x16xf32, #tpu.memory_space<vmem>>, vector<8x32x16xf32>
    "tpu.trace_start"() <{level = 10 : i32, message = "bij,bjk->bik"}> : () -> ()
    %cst = arith.constant dense<0.000000e+00> : vector<8x16x16xf32>
    %2 = tpu.matmul %0, %1, %cst {dimension_numbers = #tpu.dot_dimension_numbers<[2], [1], [1], [2], [0, 0, 0, 1, 1, 2], [0], [0]>} : vector<8x16x32xf32>, vector<8x32x16xf32>, vector<8x16x16xf32> -> vector<8x16x16xf32>
    "tpu.trace_stop"() : () -> ()
    %3 = tpu.transpose %2, [0, 2, 1] : vector<8x16x16xf32> -> vector<8x16x16xf32>
    %4 = arith.addf %2, %3 : vector<8x16x16xf32>
    %cst_5 = arith.constant 5.000000e-01 : f32
    %5 = vector.broadcast %cst_5 : f32 to vector<8x16x16xf32>
    %6 = arith.mulf %5, %4 : vector<8x16x16xf32>
    %7 = vector.shape_cast %6 : vector<8x16x16xf32> to vector<8x256xf32>
    %c0_6 = arith.constant 0 : index
    %c0_7 = arith.constant 0 : index
    %8 = vector.load %arg3[%c0_6, %c0_7] : memref<8x256xf32, #tpu.memory_space<vmem>>, vector<8x256xf32>
    tpu.vector_store %arg3[%c0_6, %c0_7], %7 {strides = array<i32>} : memref<8x256xf32, #tpu.memory_space<vmem>>, vector<8x256xf32>,
    return
  }
  func.func @transform_0(%arg0: i32) -> (i32, i32, i32) {
    %c0_i32 = arith.constant 0 : i32
    %c0_i32_0 = arith.constant 0 : i32
    %c0_i32_1 = arith.constant 0 : i32
    return %arg0, %c0_i32, %c0_i32_0 : i32, i32, i32
  }
  func.func @transform_1(%arg0: i32) -> (i32, i32, i32) {
    %c0_i32 = arith.constant 0 : i32
    %c0_i32_0 = arith.constant 0 : i32
    %c0_i32_1 = arith.constant 0 : i32
    return %arg0, %c0_i32, %c0_i32_0 : i32, i32, i32
  }
  func.func @transform_2(%arg0: i32) -> (i32, i32) {
    %c0_i32 = arith.constant 0 : i32
    %c0_i32_0 = arith.constant 0 : i32
    return %arg0, %c0_i32 : i32, i32
  }
}

</mosaic_0001>

<llo_original>
// kernel: tpu_custom_call.1
$region0: #{tpu_custom_call.1}
  #allocation0 [shape = 'u32[]', space=smem, size = 0x4, offset = 0x4, fixed_abs, tag = 'smem constant byte address 0x4 - core index']
  #allocation1 [shape = 'u32[72,128]{1,0:T(1,128)}', space=vmem, size = 0x9000, scoped, tag = 'internal scratch']
  %s0 = inlined_call_operand.vmem [shape: f32[8,16,32], index: 0, kind: input, shape index: {}]
  %s1 = inlined_call_operand.vmem [shape: f32[8,32,16], index: 1, kind: input, shape index: {}]
  %s2 = inlined_call_operand.hbm [shape: f32[8,256], index: 2, kind: output, shape index: {}]
  %s3 = sld [smem:[#allocation0]]
  $region18: #{tpu_custom_call.1} parent=0
    _
  %s5 = ssub.s32 1, %s3
  %s6 = scalar_select 0, %s5, %s3
  $region1: #{tpu_custom_call.1} parent=0
    #allocation2 [shape = 'u8[8192]{0}', space=vmem, size = 0x2000, scoped, tag = 'output window, operand 0, single buffered']
    #allocation3 [shape = 's32[1]{0}', space=sflag, size = 0x4, scoped, tag = 'scoped memory for tpu_custom_call.1']
    %7 = vsyncpa [#allocation3], 0
    // Predicated region
    $region2: #{tpu_custom_call.1} parent=1 // pred_check
      _
    $region3: #{tpu_custom_call.1} parent=1 // pred_check_branch
      %9 = sbr.rel (0) target = $region5
    $region4: #{tpu_custom_call.1} parent=1 // pred_region
      _
    $region5: #{tpu_custom_call.1} parent=1 // pred_fallthru
      _
    // Predicated region
    $region6: #{tpu_custom_call.1} parent=1 // pred_check
      _
    $region7: #{tpu_custom_call.1} parent=1 // pred_check_branch
      %11 = sbr.rel (0) target = $region9
    $region8: #{tpu_custom_call.1} parent=1 // pred_region
      _
    $region9: #{tpu_custom_call.1} parent=1 // pred_fallthru
      _
    %v12 = vld [vmem:[%s0] sm:$0xff]
    %v13 = vld [vmem:[%s0 + $0x8] sm:$0xff]
    %v14 = vld [vmem:[%s0 + $0x10] sm:$0xff]
    %v15 = vld [vmem:[%s0 + $0x18] sm:$0xff]
    %v16 = vld [vmem:[%s0 + $0x20] sm:$0xff]
    %v17 = vld [vmem:[%s0 + $0x28] sm:$0xff]
    %v18 = vld [vmem:[%s0 + $0x30] sm:$0xff]
    %v19 = vld [vmem:[%s0 + $0x38] sm:$0xff]
    %v20 = vld [vmem:[%s0 + $0x40] sm:$0xff]
    %v21 = vld [vmem:[%s0 + $0x48] sm:$0xff]
    %v22 = vld [vmem:[%s0 + $0x50] sm:$0xff]
    %v23 = vld [vmem:[%s0 + $0x58] sm:$0xff]
    %v24 = vld [vmem:[%s0 + $0x60] sm:$0xff]
    %v25 = vld [vmem:[%s0 + $0x68] sm:$0xff]
    %v26 = vld [vmem:[%s0 + $0x70] sm:$0xff]
    %v27 = vld [vmem:[%s0 + $0x78] sm:$0xff]
    %v28 = vld [vmem:[%s1] sm:$0xff]
    %v29 = vld [vmem:[%s1 + $0x8] sm:$0xff]
    %v30 = vld [vmem:[%s1 + $0x10] sm:$0xff]
    %v31 = vld [vmem:[%s1 + $0x18] sm:$0xff]
    %v32 = vld [vmem:[%s1 + $0x20] sm:$0xff]
    %v33 = vld [vmem:[%s1 + $0x28] sm:$0xff]
    %v34 = vld [vmem:[%s1 + $0x30] sm:$0xff]
    %v35 = vld [vmem:[%s1 + $0x38] sm:$0xff]
    %v36 = vld [vmem:[%s1 + $0x40] sm:$0xff]
    %v37 = vld [vmem:[%s1 + $0x48] sm:$0xff]
    %v38 = vld [vmem:[%s1 + $0x50] sm:$0xff]
    %v39 = vld [vmem:[%s1 + $0x58] sm:$0xff]
    %v40 = vld [vmem:[%s1 + $0x60] sm:$0xff]
    %v41 = vld [vmem:[%s1 + $0x68] sm:$0xff]
    %v42 = vld [vmem:[%s1 + $0x70] sm:$0xff]
    %v43 = vld [vmem:[%s1 + $0x78] sm:$0xff]
    %v44 = vld [vmem:[%s1 + $0x80] sm:$0xff]
    %v45 = vld [vmem:[%s1 + $0x88] sm:$0xff]
    %v46 = vld [vmem:[%s1 + $0x90] sm:$0xff]
    %v47 = vld [vmem:[%s1 + $0x98] sm:$0xff]
    %v48 = vld [vmem:[%s1 + $0xa0] sm:$0xff]
    %v49 = vld [vmem:[%s1 + $0xa8] sm:$0xff]
    %v50 = vld [vmem:[%s1 + $0xb0] sm:$0xff]
    %v51 = vld [vmem:[%s1 + $0xb8] sm:$0xff]
    %v52 = vld [vmem:[%s1 + $0xc0] sm:$0xff]
    %v53 = vld [vmem:[%s1 + $0xc8] sm:$0xff]
    %v54 = vld [vmem:[%s1 + $0xd0] sm:$0xff]
    %v55 = vld [vmem:[%s1 + $0xd8] sm:$0xff]
    %v56 = vld [vmem:[%s1 + $0xe0] sm:$0xff]
    %v57 = vld [vmem:[%s1 + $0xe8] sm:$0xff]
    %v58 = vld [vmem:[%s1 + $0xf0] sm:$0xff]
    %v59 = vld [vmem:[%s1 + $0xf8] sm:$0xff]
    %vm60 = vcmask 261120
    %v62 = vsel %vm60, %v12, 0
    %v65 = vsel %vm60, %v13, 0
    %67 = vmatpush.msra.mxu0 0.0
    %68 = vmatpush.msra.mxu0 0.0
    %69 = vmatpush.msra.mxu0 0.0
    %70 = vmatpush.msra.mxu0 0.0
    %71 = vmatpush.msra.mxu0 0.0
    %72 = vmatpush.msra.mxu0 0.0
    %73 = vmatpush.msra.mxu0 0.0
    %74 = vmatpush.msra.mxu0 0.0
    %75 = vmatpush.msra.mxu0 0.0
    %76 = vmatpush.msra.mxu0 0.0
    %77 = vmatpush.msra.mxu0 0.0
    %78 = vmatpush.msra.mxu0 0.0
    %79 = vmatpush.msra.mxu0 %v31
    %80 = vmatpush.msra.mxu0 %v30
    %81 = vmatpush.msra.mxu0 %v29
    %82 = vmatpush.msra.mxu0 %v28
    %83 = vmatmul.f32.gmra.mxu0 %v62
    %v84 = vpop.f32.mrf.mxu0
    %v85 = vadd.f32 0.0, %v84
    %86 = vmatmul.f32.gmra.mxu0 %v65
    %v87 = vpop.f32.mrf.mxu0
    %v88 = vadd.f32 0.0, %v87
    %89 = vdwg.mxu0
    %v91 = vsel %vm60, %v14, 0
    %v94 = vsel %vm60, %v15, 0
    %96 = vmatpush.msra.mxu0 0.0
    %97 = vmatpush.msra.mxu0 0.0
    %98 = vmatpush.msra.mxu0 0.0
    %99 = vmatpush.msra.mxu0 0.0
    %100 = vmatpush.msra.mxu0 0.0
    %101 = vmatpush.msra.mxu0 0.0
    %102 = vmatpush.msra.mxu0 0.0
    %103 = vmatpush.msra.mxu0 0.0
    %104 = vmatpush.msra.mxu0 0.0
    %105 = vmatpush.msra.mxu0 0.0
    %106 = vmatpush.msra.mxu0 0.0
    %107 = vmatpush.msra.mxu0 0.0
    %108 = vmatpush.msra.mxu0 %v35
    %109 = vmatpush.msra.mxu0 %v34
    %110 = vmatpush.msra.mxu0 %v33
    %111 = vmatpush.msra.mxu0 %v32
    %112 = vmatmul.f32.gmra.mxu0 %v91
    %v113 = vpop.f32.mrf.mxu0
    %v114 = vadd.f32 0.0, %v113
    %115 = vmatmul.f32.gmra.mxu0 %v94
    %v116 = vpop.f32.mrf.mxu0
    %v117 = vadd.f32 0.0, %v116
    %118 = vdwg.mxu0
    %v120 = vsel %vm60, %v16, 0
    %v123 = vsel %vm60, %v17, 0
    %125 = vmatpush.msra.mxu0 0.0
    %126 = vmatpush.msra.mxu0 0.0
    %127 = vmatpush.msra.mxu0 0.0
    %128 = vmatpush.msra.mxu0 0.0
    %129 = vmatpush.msra.mxu0 0.0
    %130 = vmatpush.msra.mxu0 0.0
    %131 = vmatpush.msra.mxu0 0.0
    %132 = vmatpush.msra.mxu0 0.0
    %133 = vmatpush.msra.mxu0 0.0
    %134 = vmatpush.msra.mxu0 0.0
    %135 = vmatpush.msra.mxu0 0.0
    %136 = vmatpush.msra.mxu0 0.0
    %137 = vmatpush.msra.mxu0 %v39
    %138 = vmatpush.msra.mxu0 %v38
    %139 = vmatpush.msra.mxu0 %v37
    %140 = vmatpush.msra.mxu0 %v36
    %141 = vmatmul.f32.gmra.mxu0 %v120
    %v142 = vpop.f32.mrf.mxu0
    %v143 = vadd.f32 0.0, %v142
    %144 = vmatmul.f32.gmra.mxu0 %v123
    %v145 = vpop.f32.mrf.mxu0
    %v146 = vadd.f32 0.0, %v145
    %147 = vdwg.mxu0
    %v149 = vsel %vm60, %v18, 0
    %v152 = vsel %vm60, %v19, 0
    %154 = vmatpush.msra.mxu0 0.0
    %155 = vmatpush.msra.mxu0 0.0
    %156 = vmatpush.msra.mxu0 0.0
    %157 = vmatpush.msra.mxu0 0.0
    %158 = vmatpush.msra.mxu0 0.0
    %159 = vmatpush.msra.mxu0 0.0
    %160 = vmatpush.msra.mxu0 0.0
    %161 = vmatpush.msra.mxu0 0.0
    %162 = vmatpush.msra.mxu0 0.0
    %163 = vmatpush.msra.mxu0 0.0
    %164 = vmatpush.msra.mxu0 0.0
    %165 = vmatpush.msra.mxu0 0.0
    %166 = vmatpush.msra.mxu0 %v43
    %167 = vmatpush.msra.mxu0 %v42
    %168 = vmatpush.msra.mxu0 %v41
    %169 = vmatpush.msra.mxu0 %v40
    %170 = vmatmul.f32.gmra.mxu0 %v149
    %v171 = vpop.f32.mrf.mxu0
    %v172 = vadd.f32 0.0, %v171
    %173 = vmatmul.f32.gmra.mxu0 %v152
    %v174 = vpop.f32.mrf.mxu0
    %v175 = vadd.f32 0.0, %v174
    %176 = vdwg.mxu0
    %v178 = vsel %vm60, %v20, 0
    %v181 = vsel %vm60, %v21, 0
    %183 = vmatpush.msra.mxu0 0.0
    %184 = vmatpush.msra.mxu0 0.0
    %185 = vmatpush.msra.mxu0 0.0
    %186 = vmatpush.msra.mxu0 0.0
    %187 = vmatpush.msra.mxu0 0.0
    %188 = vmatpush.msra.mxu0 0.0
    %189 = vmatpush.msra.mxu0 0.0
    %190 = vmatpush.msra.mxu0 0.0
    %191 = vmatpush.msra.mxu0 0.0
    %192 = vmatpush.msra.mxu0 0.0
    %193 = vmatpush.msra.mxu0 0.0
    %194 = vmatpush.msra.mxu0 0.0
    %195 = vmatpush.msra.mxu0 %v47
    %196 = vmatpush.msra.mxu0 %v46
    %197 = vmatpush.msra.mxu0 %v45
    %198 = vmatpush.msra.mxu0 %v44
    %199 = vmatmul.f32.gmra.mxu0 %v178
    %v200 = vpop.f32.mrf.mxu0
    %v201 = vadd.f32 0.0, %v200
    %202 = vmatmul.f32.gmra.mxu0 %v181
    %v203 = vpop.f32.mrf.mxu0
    %v204 = vadd.f32 0.0, %v203
    %205 = vdwg.mxu0
    %v207 = vsel %vm60, %v22, 0
    %v210 = vsel %vm60, %v23, 0
    %212 = vmatpush.msra.mxu0 0.0
    %213 = vmatpush.msra.mxu0 0.0
    %214 = vmatpush.msra.mxu0 0.0
    %215 = vmatpush.msra.mxu0 0.0
    %216 = vmatpush.msra.mxu0 0.0
    %217 = vmatpush.msra.mxu0 0.0
    %218 = vmatpush.msra.mxu0 0.0
    %219 = vmatpush.msra.mxu0 0.0
    %220 = vmatpush.msra.mxu0 0.0
    %221 = vmatpush.msra.mxu0 0.0
    %222 = vmatpush.msra.mxu0 0.0
    %223 = vmatpush.msra.mxu0 0.0
    %224 = vmatpush.msra.mxu0 %v51
    %225 = vmatpush.msra.mxu0 %v50
    %226 = vmatpush.msra.mxu0 %v49
    %227 = vmatpush.msra.mxu0 %v48
    %228 = vmatmul.f32.gmra.mxu0 %v207
    %v229 = vpop.f32.mrf.mxu0
    %v230 = vadd.f32 0.0, %v229
    %231 = vmatmul.f32.gmra.mxu0 %v210
    %v232 = vpop.f32.mrf.mxu0
    %v233 = vadd.f32 0.0, %v232
    %234 = vdwg.mxu0
    %v236 = vsel %vm60, %v24, 0
    %v239 = vsel %vm60, %v25, 0
    %241 = vmatpush.msra.mxu0 0.0
    %242 = vmatpush.msra.mxu0 0.0
    %243 = vmatpush.msra.mxu0 0.0
    %244 = vmatpush.msra.mxu0 0.0
    %245 = vmatpush.msra.mxu0 0.0
    %246 = vmatpush.msra.mxu0 0.0
    %247 = vmatpush.msra.mxu0 0.0
    %248 = vmatpush.msra.mxu0 0.0
    %249 = vmatpush.msra.mxu0 0.0
    %250 = vmatpush.msra.mxu0 0.0
    %251 = vmatpush.msra.mxu0 0.0
    %252 = vmatpush.msra.mxu0 0.0
    %253 = vmatpush.msra.mxu0 %v55
    %254 = vmatpush.msra.mxu0 %v54
    %255 = vmatpush.msra.mxu0 %v53
    %256 = vmatpush.msra.mxu0 %v52
    %257 = vmatmul.f32.gmra.mxu0 %v236
    %v258 = vpop.f32.mrf.mxu0
    %v259 = vadd.f32 0.0, %v258
    %260 = vmatmul.f32.gmra.mxu0 %v239
    %v261 = vpop.f32.mrf.mxu0
    %v262 = vadd.f32 0.0, %v261
    %263 = vdwg.mxu0
    %v265 = vsel %vm60, %v26, 0
    %v268 = vsel %vm60, %v27, 0
    %270 = vmatpush.msra.mxu0 0.0
    %271 = vmatpush.msra.mxu0 0.0
    %272 = vmatpush.msra.mxu0 0.0
    %273 = vmatpush.msra.mxu0 0.0
    %274 = vmatpush.msra.mxu0 0.0
    %275 = vmatpush.msra.mxu0 0.0
    %276 = vmatpush.msra.mxu0 0.0
    %277 = vmatpush.msra.mxu0 0.0
    %278 = vmatpush.msra.mxu0 0.0
    %279 = vmatpush.msra.mxu0 0.0
    %280 = vmatpush.msra.mxu0 0.0
    %281 = vmatpush.msra.mxu0 0.0
    %282 = vmatpush.msra.mxu0 %v59
    %283 = vmatpush.msra.mxu0 %v58
    %284 = vmatpush.msra.mxu0 %v57
    %285 = vmatpush.msra.mxu0 %v56
    %286 = vmatmul.f32.gmra.mxu0 %v265
    %v287 = vpop.f32.mrf.mxu0
    %v288 = vadd.f32 0.0, %v287
    %289 = vmatmul.f32.gmra.mxu0 %v268
    %v290 = vpop.f32.mrf.mxu0
    %v291 = vadd.f32 0.0, %v290
    %292 = vdwg.mxu0
    %293 = vxpose.xlu0.b32.start [1/16] %v85, 128
    %294 = vxpose.xlu0.b32.cont [2/16] %v88, 128
    %295 = vxpose.xlu0.b32.cont [3/16] 0.0, 128
    %296 = vxpose.xlu0.b32.cont [4/16] 0.0, 128
    %297 = vxpose.xlu0.b32.cont [5/16] 0.0, 128
    %298 = vxpose.xlu0.b32.cont [6/16] 0.0, 128
    %299 = vxpose.xlu0.b32.cont [7/16] 0.0, 128
    %300 = vxpose.xlu0.b32.cont [8/16] 0.0, 128
    %301 = vxpose.xlu0.b32.cont [9/16] 0.0, 128
    %302 = vxpose.xlu0.b32.cont [10/16] 0.0, 128
    %303 = vxpose.xlu0.b32.cont [11/16] 0.0, 128
    %304 = vxpose.xlu0.b32.cont [12/16] 0.0, 128
    %305 = vxpose.xlu0.b32.cont [13/16] 0.0, 128
    %306 = vxpose.xlu0.b32.cont [14/16] 0.0, 128
    %307 = vxpose.xlu0.b32.cont [15/16] 0.0, 128
    %308 = vxpose.xlu0.b32.end [16/16] 0.0, 128
    %v309 = vpop.trf.xlu0
    %v310 = vpop.trf.xlu0
    %v311 = vpop.trf.xlu0
    %v312 = vpop.trf.xlu0
    %v313 = vpop.trf.xlu0
    %v314 = vpop.trf.xlu0
    %v315 = vpop.trf.xlu0
    %v316 = vpop.trf.xlu0
    %v317 = vpop.trf.xlu0
    %v318 = vpop.trf.xlu0
    %v319 = vpop.trf.xlu0
    %v320 = vpop.trf.xlu0
    %v321 = vpop.trf.xlu0
    %v322 = vpop.trf.xlu0
    %v323 = vpop.trf.xlu0
    %v324 = vpop.trf.xlu0
    %325 = vxpose.xlu0.b32.start [1/16] %v114, 128
    %326 = vxpose.xlu0.b32.cont [2/16] %v117, 128
    %327 = vxpose.xlu0.b32.cont [3/16] 0.0, 128
    %328 = vxpose.xlu0.b32.cont [4/16] 0.0, 128
    %329 = vxpose.xlu0.b32.cont [5/16] 0.0, 128
    %330 = vxpose.xlu0.b32.cont [6/16] 0.0, 128
    %331 = vxpose.xlu0.b32.cont [7/16] 0.0, 128
    %332 = vxpose.xlu0.b32.cont [8/16] 0.0, 128
    %333 = vxpose.xlu0.b32.cont [9/16] 0.0, 128
    %334 = vxpose.xlu0.b32.cont [10/16] 0.0, 128
    %335 = vxpose.xlu0.b32.cont [11/16] 0.0, 128
    %336 = vxpose.xlu0.b32.cont [12/16] 0.0, 128
    %337 = vxpose.xlu0.b32.cont [13/16] 0.0, 128
    %338 = vxpose.xlu0.b32.cont [14/16] 0.0, 128
    %339 = vxpose.xlu0.b32.cont [15/16] 0.0, 128
    %340 = vxpose.xlu0.b32.end [16/16] 0.0, 128
    %v341 = vpop.trf.xlu0
    %v342 = vpop.trf.xlu0
    %v343 = vpop.trf.xlu0
    %v344 = vpop.trf.xlu0
    %v345 = vpop.trf.xlu0
    %v346 = vpop.trf.xlu0
    %v347 = vpop.trf.xlu0
    %v348 = vpop.trf.xlu0
    %v349 = vpop.trf.xlu0
    %v350 = vpop.trf.xlu0
    %v351 = vpop.trf.xlu0
    %v352 = vpop.trf.xlu0
    %v353 = vpop.trf.xlu0
    %v354 = vpop.trf.xlu0
    %v355 = vpop.trf.xlu0
    %v356 = vpop.trf.xlu0
    %357 = vxpose.xlu0.b32.start [1/16] %v143, 128
    %358 = vxpose.xlu0.b32.cont [2/16] %v146, 128
    %359 = vxpose.xlu0.b32.cont [3/16] 0.0, 128
    %360 = vxpose.xlu0.b32.cont [4/16] 0.0, 128
    %361 = vxpose.xlu0.b32.cont [5/16] 0.0, 128
    %362 = vxpose.xlu0.b32.cont [6/16] 0.0, 128
    %363 = vxpose.xlu0.b32.cont [7/16] 0.0, 128
    %364 = vxpose.xlu0.b32.cont [8/16] 0.0, 128
    %365 = vxpose.xlu0.b32.cont [9/16] 0.0, 128
    %366 = vxpose.xlu0.b32.cont [10/16] 0.0, 128
    %367 = vxpose.xlu0.b32.cont [11/16] 0.0, 128
    %368 = vxpose.xlu0.b32.cont [12/16] 0.0, 128
    %369 = vxpose.xlu0.b32.cont [13/16] 0.0, 128
    %370 = vxpose.xlu0.b32.cont [14/16] 0.0, 128
    %371 = vxpose.xlu0.b32.cont [15/16] 0.0, 128
    %372 = vxpose.xlu0.b32.end [16/16] 0.0, 128
    %v373 = vpop.trf.xlu0
    %v374 = vpop.trf.xlu0
    %v375 = vpop.trf.xlu0
    %v376 = vpop.trf.xlu0
    %v377 = vpop.trf.xlu0
    %v378 = vpop.trf.xlu0
    %v379 = vpop.trf.xlu0
    %v380 = vpop.trf.xlu0
    %v381 = vpop.trf.xlu0
    %v382 = vpop.trf.xlu0
    %v383 = vpop.trf.xlu0
    %v384 = vpop.trf.xlu0
    %v385 = vpop.trf.xlu0
    %v386 = vpop.trf.xlu0
    %v387 = vpop.trf.xlu0
    %v388 = vpop.trf.xlu0
    %389 = vxpose.xlu0.b32.start [1/16] %v172, 128
    %390 = vxpose.xlu0.b32.cont [2/16] %v175, 128
    %391 = vxpose.xlu0.b32.cont [3/16] 0.0, 128
    %392 = vxpose.xlu0.b32.cont [4/16] 0.0, 128
    %393 = vxpose.xlu0.b32.cont [5/16] 0.0, 128
    %394 = vxpose.xlu0.b32.cont [6/16] 0.0, 128
    %395 = vxpose.xlu0.b32.cont [7/16] 0.0, 128
    %396 = vxpose.xlu0.b32.cont [8/16] 0.0, 128
    %397 = vxpose.xlu0.b32.cont [9/16] 0.0, 128
    %398 = vxpose.xlu0.b32.cont [10/16] 0.0, 128
    %399 = vxpose.xlu0.b32.cont [11/16] 0.0, 128
    %400 = vxpose.xlu0.b32.cont [12/16] 0.0, 128
    %401 = vxpose.xlu0.b32.cont [13/16] 0.0, 128
    %402 = vxpose.xlu0.b32.cont [14/16] 0.0, 128
    %403 = vxpose.xlu0.b32.cont [15/16] 0.0, 128
    %404 = vxpose.xlu0.b32.end [16/16] 0.0, 128
    %v405 = vpop.trf.xlu0
    %v406 = vpop.trf.xlu0
    %v407 = vpop.trf.xlu0
    %v408 = vpop.trf.xlu0
    %v409 = vpop.trf.xlu0
    %v410 = vpop.trf.xlu0
    %v411 = vpop.trf.xlu0
    %v412 = vpop.trf.xlu0
    %v413 = vpop.trf.xlu0
    %v414 = vpop.trf.xlu0
    %v415 = vpop.trf.xlu0
    %v416 = vpop.trf.xlu0
    %v417 = vpop.trf.xlu0
    %v418 = vpop.trf.xlu0
    %v419 = vpop.trf.xlu0
    %v420 = vpop.trf.xlu0
    %421 = vxpose.xlu0.b32.start [1/16] %v201, 128
    %422 = vxpose.xlu0.b32.cont [2/16] %v204, 128
    %423 = vxpose.xlu0.b32.cont [3/16] 0.0, 128
    %424 = vxpose.xlu0.b32.cont [4/16] 0.0, 128
    %425 = vxpose.xlu0.b32.cont [5/16] 0.0, 128
    %426 = vxpose.xlu0.b32.cont [6/16] 0.0, 128
    %427 = vxpose.xlu0.b32.cont [7/16] 0.0, 128
    %428 = vxpose.xlu0.b32.cont [8/16] 0.0, 128
    %429 = vxpose.xlu0.b32.cont [9/16] 0.0, 128
    %430 = vxpose.xlu0.b32.cont [10/16] 0.0, 128
    %431 = vxpose.xlu0.b32.cont [11/16] 0.0, 128
    %432 = vxpose.xlu0.b32.cont [12/16] 0.0, 128
    %433 = vxpose.xlu0.b32.cont [13/16] 0.0, 128
    %434 = vxpose.xlu0.b32.cont [14/16] 0.0, 128
    %435 = vxpose.xlu0.b32.cont [15/16] 0.0, 128
    %436 = vxpose.xlu0.b32.end [16/16] 0.0, 128
    %v437 = vpop.trf.xlu0
    %v438 = vpop.trf.xlu0
    %v439 = vpop.trf.xlu0
    %v440 = vpop.trf.xlu0
    %v441 = vpop.trf.xlu0
    %v442 = vpop.trf.xlu0
    %v443 = vpop.trf.xlu0
    %v444 = vpop.trf.xlu0
    %v445 = vpop.trf.xlu0
    %v446 = vpop.trf.xlu0
    %v447 = vpop.trf.xlu0
    %v448 = vpop.trf.xlu0
    %v449 = vpop.trf.xlu0
    %v450 = vpop.trf.xlu0
    %v451 = vpop.trf.xlu0
    %v452 = vpop.trf.xlu0
    %453 = vxpose.xlu0.b32.start [1/16] %v230, 128
    %454 = vxpose.xlu0.b32.cont [2/16] %v233, 128
    %455 = vxpose.xlu0.b32.cont [3/16] 0.0, 128
    %456 = vxpose.xlu0.b32.cont [4/16] 0.0, 128
    %457 = vxpose.xlu0.b32.cont [5/16] 0.0, 128
    %458 = vxpose.xlu0.b32.cont [6/16] 0.0, 128
    %459 = vxpose.xlu0.b32.cont [7/16] 0.0, 128
    %460 = vxpose.xlu0.b32.cont [8/16] 0.0, 128
    %461 = vxpose.xlu0.b32.cont [9/16] 0.0, 128
    %462 = vxpose.xlu0.b32.cont [10/16] 0.0, 128
    %463 = vxpose.xlu0.b32.cont [11/16] 0.0, 128
    %464 = vxpose.xlu0.b32.cont [12/16] 0.0, 128
    %465 = vxpose.xlu0.b32.cont [13/16] 0.0, 128
    %466 = vxpose.xlu0.b32.cont [14/16] 0.0, 128
    %467 = vxpose.xlu0.b32.cont [15/16] 0.0, 128
    %468 = vxpose.xlu0.b32.end [16/16] 0.0, 128
    %v469 = vpop.trf.xlu0
    %v470 = vpop.trf.xlu0
    %v471 = vpop.trf.xlu0
    %v472 = vpop.trf.xlu0
    %v473 = vpop.trf.xlu0
    %v474 = vpop.trf.xlu0
    %v475 = vpop.trf.xlu0
    %v476 = vpop.trf.xlu0
    %v477 = vpop.trf.xlu0
    %v478 = vpop.trf.xlu0
    %v479 = vpop.trf.xlu0
    %v480 = vpop.trf.xlu0
    %v481 = vpop.trf.xlu0
    %v482 = vpop.trf.xlu0
    %v483 = vpop.trf.xlu0
    %v484 = vpop.trf.xlu0
    %485 = vxpose.xlu0.b32.start [1/16] %v259, 128
    %486 = vxpose.xlu0.b32.cont [2/16] %v262, 128
    %487 = vxpose.xlu0.b32.cont [3/16] 0.0, 128
    %488 = vxpose.xlu0.b32.cont [4/16] 0.0, 128
    %489 = vxpose.xlu0.b32.cont [5/16] 0.0, 128
    %490 = vxpose.xlu0.b32.cont [6/16] 0.0, 128
    %491 = vxpose.xlu0.b32.cont [7/16] 0.0, 128
    %492 = vxpose.xlu0.b32.cont [8/16] 0.0, 128
    %493 = vxpose.xlu0.b32.cont [9/16] 0.0, 128
    %494 = vxpose.xlu0.b32.cont [10/16] 0.0, 128
    %495 = vxpose.xlu0.b32.cont [11/16] 0.0, 128
    %496 = vxpose.xlu0.b32.cont [12/16] 0.0, 128
    %497 = vxpose.xlu0.b32.cont [13/16] 0.0, 128
    %498 = vxpose.xlu0.b32.cont [14/16] 0.0, 128
    %499 = vxpose.xlu0.b32.cont [15/16] 0.0, 128
    %500 = vxpose.xlu0.b32.end [16/16] 0.0, 128
    %v501 = vpop.trf.xlu0
    %v502 = vpop.trf.xlu0
    %v503 = vpop.trf.xlu0
    %v504 = vpop.trf.xlu0
    %v505 = vpop.trf.xlu0
    %v506 = vpop.trf.xlu0
    %v507 = vpop.trf.xlu0
    %v508 = vpop.trf.xlu0
    %v509 = vpop.trf.xlu0
    %v510 = vpop.trf.xlu0
    %v511 = vpop.trf.xlu0
    %v512 = vpop.trf.xlu0
    %v513 = vpop.trf.xlu0
    %v514 = vpop.trf.xlu0
    %v515 = vpop.trf.xlu0
    %v516 = vpop.trf.xlu0
    %517 = vxpose.xlu0.b32.start [1/16] %v288, 128
    %518 = vxpose.xlu0.b32.cont [2/16] %v291, 128
    %519 = vxpose.xlu0.b32.cont [3/16] 0.0, 128
    %520 = vxpose.xlu0.b32.cont [4/16] 0.0, 128
    %521 = vxpose.xlu0.b32.cont [5/16] 0.0, 128
    %522 = vxpose.xlu0.b32.cont [6/16] 0.0, 128
    %523 = vxpose.xlu0.b32.cont [7/16] 0.0, 128
    %524 = vxpose.xlu0.b32.cont [8/16] 0.0, 128
    %525 = vxpose.xlu0.b32.cont [9/16] 0.0, 128
    %526 = vxpose.xlu0.b32.cont [10/16] 0.0, 128
    %527 = vxpose.xlu0.b32.cont [11/16] 0.0, 128
    %528 = vxpose.xlu0.b32.cont [12/16] 0.0, 128
    %529 = vxpose.xlu0.b32.cont [13/16] 0.0, 128
    %530 = vxpose.xlu0.b32.cont [14/16] 0.0, 128
    %531 = vxpose.xlu0.b32.cont [15/16] 0.0, 128
    %532 = vxpose.xlu0.b32.end [16/16] 0.0, 128
    %v533 = vpop.trf.xlu0
    %v534 = vpop.trf.xlu0
    %v535 = vpop.trf.xlu0
    %v536 = vpop.trf.xlu0
    %v537 = vpop.trf.xlu0
    %v538 = vpop.trf.xlu0
    %v539 = vpop.trf.xlu0
    %v540 = vpop.trf.xlu0
    %v541 = vpop.trf.xlu0
    %v542 = vpop.trf.xlu0
    %v543 = vpop.trf.xlu0
    %v544 = vpop.trf.xlu0
    %v545 = vpop.trf.xlu0
    %v546 = vpop.trf.xlu0
    %v547 = vpop.trf.xlu0
    %v548 = vpop.trf.xlu0
    %v549 = vadd.f32 %v85, %v309
    %v550 = vadd.f32 %v88, %v310
    %v551 = vadd.f32 %v114, %v341
    %v552 = vadd.f32 %v117, %v342
    %v553 = vadd.f32 %v143, %v373
    %v554 = vadd.f32 %v146, %v374
    %v555 = vadd.f32 %v172, %v405
    %v556 = vadd.f32 %v175, %v406
    %v557 = vadd.f32 %v201, %v437
    %v558 = vadd.f32 %v204, %v438
    %v559 = vadd.f32 %v230, %v469
    %v560 = vadd.f32 %v233, %v470
    %v561 = vadd.f32 %v259, %v501
    %v562 = vadd.f32 %v262, %v502
    %v563 = vadd.f32 %v288, %v533
    %v564 = vadd.f32 %v291, %v534
    %v565 = vmul.f32 %v549, 0.5
    %v566 = vmul.f32 %v550, 0.5
    %v567 = vmul.f32 %v551, 0.5
    %v568 = vmul.f32 %v552, 0.5
    %v569 = vmul.f32 %v553, 0.5
    %v570 = vmul.f32 %v554, 0.5
    %v571 = vmul.f32 %v555, 0.5
    %v572 = vmul.f32 %v556, 0.5
    %v573 = vmul.f32 %v557, 0.5
    %v574 = vmul.f32 %v558, 0.5
    %v575 = vmul.f32 %v559, 0.5
    %v576 = vmul.f32 %v560, 0.5
    %v577 = vmul.f32 %v561, 0.5
    %v578 = vmul.f32 %v562, 0.5
    %v579 = vmul.f32 %v563, 0.5
    %v580 = vmul.f32 %v564, 0.5
    %v581 = vrot.slane %v569, 4
    %vm582 = vcmask 1047556
    %v583 = vsel %vm582, %v581, %v565
    %v584 = vrot.slane %v565, 4
    %v585 = vsel %vm582, %v569, %v584
    %v587 = vunpack.c.l.s4 1983009808
    %v588 = vunpack.c.0.s8 %v587
    %v589 = vperm.slane %v583, %v588
    %v591 = vunpack.c.l.s4 1983009808
    %v592 = vunpack.c.0.s8 %v591
    %v593 = vperm.slane %v585, %v592
    %v594 = vrot.slane %v571, 4
    %v595 = vsel %vm582, %v594, %v567
    %v596 = vrot.slane %v567, 4
    %v597 = vsel %vm582, %v571, %v596
    %v599 = vunpack.c.l.s4 1983009808
    %v600 = vunpack.c.0.s8 %v599
    %v601 = vperm.slane %v595, %v600
    %v603 = vunpack.c.l.s4 1983009808
    %v604 = vunpack.c.0.s8 %v603
    %v605 = vperm.slane %v597, %v604
    %v606 = vrot.slane %v577, 4
    %v607 = vsel %vm582, %v606, %v573
    %v608 = vrot.slane %v573, 4
    %v609 = vsel %vm582, %v577, %v608
    %v611 = vunpack.c.l.s4 1983009808
    %v612 = vunpack.c.0.s8 %v611
    %v613 = vperm.slane %v607, %v612
    %v615 = vunpack.c.l.s4 1983009808
    %v616 = vunpack.c.0.s8 %v615
    %v617 = vperm.slane %v609, %v616
    %v618 = vrot.slane %v579, 4
    %v619 = vsel %vm582, %v618, %v575
    %v620 = vrot.slane %v575, 4
    %v621 = vsel %vm582, %v579, %v620
    %v623 = vunpack.c.l.s4 1983009808
    %v624 = vunpack.c.0.s8 %v623
    %v625 = vperm.slane %v619, %v624
    %v627 = vunpack.c.l.s4 1983009808
    %v628 = vunpack.c.0.s8 %v627
    %v629 = vperm.slane %v621, %v628
    %v630 = vrot.slane %v601, 4
    %v631 = vsel %vm582, %v630, %v589
    %v632 = vrot.slane %v589, 4
    %v633 = vsel %vm582, %v601, %v632
    %v635 = vunpack.c.l.s4 1934713408
    %v636 = vunpack.c.0.s8 %v635
    %v637 = vperm.slane %v631, %v636
    %v639 = vunpack.c.l.s4 1934713408
    %v640 = vunpack.c.0.s8 %v639
    %v641 = vperm.slane %v633, %v640
    %v642 = vrot.slane %v605, 4
    %v643 = vsel %vm582, %v642, %v593
    %v644 = vrot.slane %v593, 4
    %v645 = vsel %vm582, %v605, %v644
    %v647 = vunpack.c.l.s4 1934713408
    %v648 = vunpack.c.0.s8 %v647
    %v649 = vperm.slane %v643, %v648
    %v651 = vunpack.c.l.s4 1934713408
    %v652 = vunpack.c.0.s8 %v651
    %v653 = vperm.slane %v645, %v652
    %v654 = vrot.slane %v625, 4
    %v655 = vsel %vm582, %v654, %v613
    %v656 = vrot.slane %v613, 4
    %v657 = vsel %vm582, %v625, %v656
    %v659 = vunpack.c.l.s4 1934713408
    %v660 = vunpack.c.0.s8 %v659
    %v661 = vperm.slane %v655, %v660
    %v663 = vunpack.c.l.s4 1934713408
    %v664 = vunpack.c.0.s8 %v663
    %v665 = vperm.slane %v657, %v664
    %v666 = vrot.slane %v629, 4
    %v667 = vsel %vm582, %v666, %v617
    %v668 = vrot.slane %v617, 4
    %v669 = vsel %vm582, %v629, %v668
    %v671 = vunpack.c.l.s4 1934713408
    %v672 = vunpack.c.0.s8 %v671
    %v673 = vperm.slane %v667, %v672
    %v675 = vunpack.c.l.s4 1934713408
    %v676 = vunpack.c.0.s8 %v675
    %v677 = vperm.slane %v669, %v676
    %v678 = vrot.slane %v661, 4
    %v679 = vsel %vm582, %v678, %v637
    %v680 = vrot.slane %v637, 4
    %v681 = vsel %vm582, %v661, %v680
    %v682 = vrot.slane %v665, 4
    %v683 = vsel %vm582, %v682, %v641
    %v684 = vrot.slane %v641, 4
    %v685 = vsel %vm582, %v665, %v684
    %v686 = vrot.slane %v673, 4
    %v687 = vsel %vm582, %v686, %v649
    %v688 = vrot.slane %v649, 4
    %v689 = vsel %vm582, %v673, %v688
    %v690 = vrot.slane %v677, 4
    %v691 = vsel %vm582, %v690, %v653
    %v692 = vrot.slane %v653, 4
    %v693 = vsel %vm582, %v677, %v692
    %v694 = vrot.slane %v570, 4
    %v695 = vsel %vm582, %v694, %v566
    %v696 = vrot.slane %v566, 4
    %v697 = vsel %vm582, %v570, %v696
    %v699 = vunpack.c.l.s4 1983009808
    %v700 = vunpack.c.0.s8 %v699
    %v701 = vperm.slane %v695, %v700
    %v703 = vunpack.c.l.s4 1983009808
    %v704 = vunpack.c.0.s8 %v703
    %v705 = vperm.slane %v697, %v704
    %v706 = vrot.slane %v572, 4
    %v707 = vsel %vm582, %v706, %v568
    %v708 = vrot.slane %v568, 4
    %v709 = vsel %vm582, %v572, %v708
    %v711 = vunpack.c.l.s4 1983009808
    %v712 = vunpack.c.0.s8 %v711
    %v713 = vperm.slane %v707, %v712
    %v715 = vunpack.c.l.s4 1983009808
    %v716 = vunpack.c.0.s8 %v715
    %v717 = vperm.slane %v709, %v716
    %v718 = vrot.slane %v578, 4
    %v719 = vsel %vm582, %v718, %v574
    %v720 = vrot.slane %v574, 4
    %v721 = vsel %vm582, %v578, %v720
    %v723 = vunpack.c.l.s4 1983009808
    %v724 = vunpack.c.0.s8 %v723
    %v725 = vperm.slane %v719, %v724
    %v727 = vunpack.c.l.s4 1983009808
    %v728 = vunpack.c.0.s8 %v727
    %v729 = vperm.slane %v721, %v728
    %v730 = vrot.slane %v580, 4
    %v731 = vsel %vm582, %v730, %v576
    %v732 = vrot.slane %v576, 4
    %v733 = vsel %vm582, %v580, %v732
    %v735 = vunpack.c.l.s4 1983009808
    %v736 = vunpack.c.0.s8 %v735
    %v737 = vperm.slane %v731, %v736
    %v739 = vunpack.c.l.s4 1983009808
    %v740 = vunpack.c.0.s8 %v739
    %v741 = vperm.slane %v733, %v740
    %v742 = vrot.slane %v713, 4
    %v743 = vsel %vm582, %v742, %v701
    %v744 = vrot.slane %v701, 4
    %v745 = vsel %vm582, %v713, %v744
    %v747 = vunpack.c.l.s4 1934713408
    %v748 = vunpack.c.0.s8 %v747
    %v749 = vperm.slane %v743, %v748
    %v751 = vunpack.c.l.s4 1934713408
    %v752 = vunpack.c.0.s8 %v751
    %v753 = vperm.slane %v745, %v752
    %v754 = vrot.slane %v717, 4
    %v755 = vsel %vm582, %v754, %v705
    %v756 = vrot.slane %v705, 4
    %v757 = vsel %vm582, %v717, %v756
    %v759 = vunpack.c.l.s4 1934713408
    %v760 = vunpack.c.0.s8 %v759
    %v761 = vperm.slane %v755, %v760
    %v763 = vunpack.c.l.s4 1934713408
    %v764 = vunpack.c.0.s8 %v763
    %v765 = vperm.slane %v757, %v764
    %v766 = vrot.slane %v737, 4
    %v767 = vsel %vm582, %v766, %v725
    %v768 = vrot.slane %v725, 4
    %v769 = vsel %vm582, %v737, %v768
    %v771 = vunpack.c.l.s4 1934713408
    %v772 = vunpack.c.0.s8 %v771
    %v773 = vperm.slane %v767, %v772
    %v775 = vunpack.c.l.s4 1934713408
    %v776 = vunpack.c.0.s8 %v775
    %v777 = vperm.slane %v769, %v776
    %v778 = vrot.slane %v741, 4
    %v779 = vsel %vm582, %v778, %v729
    %v780 = vrot.slane %v729, 4
    %v781 = vsel %vm582, %v741, %v780
    %v783 = vunpack.c.l.s4 1934713408
    %v784 = vunpack.c.0.s8 %v783
    %v785 = vperm.slane %v779, %v784
    %v787 = vunpack.c.l.s4 1934713408
    %v788 = vunpack.c.0.s8 %v787
    %v789 = vperm.slane %v781, %v788
    %v790 = vrot.slane %v773, 4
    %v791 = vsel %vm582, %v790, %v749
    %v792 = vrot.slane %v749, 4
    %v793 = vsel %vm582, %v773, %v792
    %v794 = vrot.slane %v777, 4
    %v795 = vsel %vm582, %v794, %v753
    %v796 = vrot.slane %v753, 4
    %v797 = vsel %vm582, %v777, %v796
    %v798 = vrot.slane %v785, 4
    %v799 = vsel %vm582, %v798, %v761
    %v800 = vrot.slane %v761, 4
    %v801 = vsel %vm582, %v785, %v800
    %v802 = vrot.slane %v789, 4
    %v803 = vsel %vm582, %v802, %v765
    %v804 = vrot.slane %v765, 4
    %v805 = vsel %vm582, %v789, %v804
    %807 = vrot.lane.b32.xlu0 %v681, 16
    %v808 = vpop.permute.xlu0 %807
    %811 = vrot.lane.b32.xlu0 %v683, 32
    %v812 = vpop.permute.xlu0 %811
    %815 = vrot.lane.b32.xlu0 %v685, 48
    %v816 = vpop.permute.xlu0 %815
    %819 = vrot.lane.b32.xlu0 %v687, 64
    %v820 = vpop.permute.xlu0 %819
    %823 = vrot.lane.b32.xlu0 %v689, 80
    %v824 = vpop.permute.xlu0 %823
    %827 = vrot.lane.b32.xlu0 %v691, 96
    %v828 = vpop.permute.xlu0 %827
    %831 = vrot.lane.b32.xlu0 %v693, 112
    %v832 = vpop.permute.xlu0 %831
    %835 = vrot.lane.b32.xlu0 %v793, 16
    %v836 = vpop.permute.xlu0 %835
    %839 = vrot.lane.b32.xlu0 %v795, 32
    %v840 = vpop.permute.xlu0 %839
    %843 = vrot.lane.b32.xlu0 %v797, 48
    %v844 = vpop.permute.xlu0 %843
    %847 = vrot.lane.b32.xlu0 %v799, 64
    %v848 = vpop.permute.xlu0 %847
    %851 = vrot.lane.b32.xlu0 %v801, 80
    %v852 = vpop.permute.xlu0 %851
    %855 = vrot.lane.b32.xlu0 %v803, 96
    %v856 = vpop.permute.xlu0 %855
    %859 = vrot.lane.b32.xlu0 %v805, 112
    %v860 = vpop.permute.xlu0 %859
    %vm862 = vcmask 130048
    %v863 = vsel %vm862, %v679, %v808
    %v864 = vsel %vm60, %v863, %v812
    %vm865 = vcmask 392192
    %v866 = vsel %vm865, %v864, %v816
    %vm867 = vcmask 523264
    %v868 = vsel %vm867, %v866, %v820
    %vm869 = vcmask 654336
    %v870 = vsel %vm869, %v868, %v824
    %vm871 = vcmask 785408
    %v872 = vsel %vm871, %v870, %v828
    %vm873 = vcmask 916480
    %v874 = vsel %vm873, %v872, %v832
    %v875 = vsel %vm862, %v791, %v836
    %v876 = vsel %vm60, %v875, %v840
    %v877 = vsel %vm865, %v876, %v844
    %v878 = vsel %vm867, %v877, %v848
    %v879 = vsel %vm869, %v878, %v852
    %v880 = vsel %vm871, %v879, %v856
    %v881 = vsel %vm873, %v880, %v860
    %882 = vst [vmem:[#allocation2] sm:$0xff] %v874
    %883 = vst [vmem:[#allocation2 + $0x8] sm:$0xff] %v881
    // Predicated region
    $region10: #{tpu_custom_call.1} parent=1 // pred_check
      _
    $region11: #{tpu_custom_call.1} parent=1 // pred_check_branch
      %885 = sbr.rel (0) target = $region13
    $region12: #{tpu_custom_call.1} parent=1 // pred_region
      %887 = vsyncadd [#allocation3], 0
      %s889 = sshll.u32 [#allocation2], 4
      %s890 = int_to_ptr.vmem [resolvable:$true] %s889
      %s891 = sshll.u32 %s2, 4
      %s892 = int_to_ptr.hbm [resolvable:$true] %s891
      %894 = dma.vmem_to_hbm [thread:$0]  %s890, 256, %s892, [#allocation3]
    $region13: #{tpu_custom_call.1} parent=1 // pred_fallthru
      _
    // Predicated region
    $region14: #{tpu_custom_call.1} parent=1 // pred_check
      _
    $region15: #{tpu_custom_call.1} parent=1 // pred_check_branch
      %896 = sbr.rel (0) target = $region17
    $region16: #{tpu_custom_call.1} parent=1 // pred_region
      %898 = dma.done [#allocation3], 256
    $region17: #{tpu_custom_call.1} parent=1 // pred_fallthru
      _
    %899 = vsyncpa [#allocation3], 1

</llo_original>
